<compile_context>
chip_gen: v7x
topology: tpu7x:2x2x1
jax: 0.10.0
libtpu: 0.0.40
codegen_flags: <defaults>
</compile_context>

<pallas_src>
import math

import jax
import jax.numpy as jnp
from jax.experimental import pallas as pl
from jax.experimental.pallas import tpu as pltpu


# --------------------------------------------------------------------------
# Kernels
# --------------------------------------------------------------------------
def _mm_acc_kernel(x_ref, w_ref, o_ref, acc_ref):
    """Output-stationary matmul, K innermost, fp32 VMEM accumulator."""
    @pl.when(pl.program_id(2) == 0)
    def _():
        acc_ref[...] = jnp.zeros_like(acc_ref)

    acc_ref[...] += jnp.dot(
        x_ref[...], w_ref[...], preferred_element_type=jnp.float32
    )

    @pl.when(pl.program_id(2) == pl.num_programs(2) - 1)
    def _():
        o_ref[...] = acc_ref[...].astype(o_ref.dtype)


def _mm_acc_bias_kernel(x_ref, w_ref, b_ref, o_ref, acc_ref):
    @pl.when(pl.program_id(2) == 0)
    def _():
        acc_ref[...] = jnp.zeros_like(acc_ref)

    acc_ref[...] += jnp.dot(
        x_ref[...], w_ref[...], preferred_element_type=jnp.float32
    )

    @pl.when(pl.program_id(2) == pl.num_programs(2) - 1)
    def _():
        # fp32 bias add before the output cast.
        o_ref[...] = (acc_ref[...] + b_ref[...]).astype(o_ref.dtype)


def _mm_single_kernel(x_ref, w_ref, o_ref):
    """K fits in one tile: no accumulator scratch round trip."""
    o_ref[...] = jnp.dot(
        x_ref[...], w_ref[...], preferred_element_type=jnp.float32
    ).astype(o_ref.dtype)


def _mm_single_bias_kernel(x_ref, w_ref, b_ref, o_ref):
    o_ref[...] = (
        jnp.dot(x_ref[...], w_ref[...], preferred_element_type=jnp.float32)
        + b_ref[...]
    ).astype(o_ref.dtype)


# --------------------------------------------------------------------------
# Helpers
# --------------------------------------------------------------------------
def _cdiv(a, b):
    return -(-a // b)


def _round_up(x, m):
    return _cdiv(x, m) * m


def _vmem_capacity_bytes():
    """Physical VMEM per TensorCore; conservative 64 MiB fallback (v7x)."""
    try:
        info = pltpu.get_tpu_info()
        cap = getattr(info, "vmem_capacity_bytes", None)
        if cap:
            return int(cap)
    except Exception:
        pass
    return 64 << 20


def _choose_tile(dim, target, align):
    """Full extent for small dims; otherwise an `align`-multiple <= target."""
    if dim <= target:
        return dim
    return min(dim, max(align, (target // align) * align))


def _largest_aligned_divisor(total, target, align=128):
    """Largest `align`-multiple divisor of `total` that is <= max(target, align).

    `total` must be a multiple of `align`.
    """
    units = total // align
    limit = max(1, target // align)
    best = 1
    for g in range(1, min(units, limit) + 1):
        if units % g == 0:
            best = g
    return best * align


# --------------------------------------------------------------------------
# Wrapper
# --------------------------------------------------------------------------
def pallas_linear(x, weight_kn, bias=None, *, tm=None, tn=None, tk=None):
    """y = x @ weight_kn (+ bias).

    Args:
      x:         (..., K) activations (bf16 typically).
      weight_kn: (Kw, N) weight, already transposed once at init.  Kw may be
                 >= K with zero rows appended (pre-padded at init); the extra
                 rows must be zero.
      bias:      optional (N,) bias (added in fp32 inside the kernel epilogue).
      tm/tn/tk:  requested tile targets.  None -> generation-aware defaults.
    """
    Kw, N = weight_kn.shape
    K = x.shape[-1]
    assert Kw >= K, "weight K extent must cover x's feature dimension"

    lead_shape = x.shape[:-1]
    M = math.prod(lead_shape) if lead_shape else 1
    x2d = x.reshape(M, K)

    vmem_cap = _vmem_capacity_bytes()

    # --- default tile targets (sized for the 256x256 MXUs, ~10-20 MiB VMEM) -
    if tm is None:
        tm = 512
    if tn is None:
        tn = 1024
    if tk is None:
        tk = 2048 if vmem_cap >= (96 << 20) else 1024  # v5e/v6e can go deeper

    in_b = x2d.dtype.itemsize
    w_b = weight_kn.dtype.itemsize
    out_b = x.dtype.itemsize

    # --- K axis: shared, zero-padded extent (exact for the matmul) ----------
    # The module pre-pads the weight to a 128-multiple at init, so the
    # per-call weight pad below is a fallback for raw callers only.
    if Kw <= tk:
        Kp = Kw
    else:
        Kp = _round_up(Kw, 128)
    if Kp != Kw:
        weight_kn = jnp.pad(weight_kn, ((0, Kp - Kw), (0, 0)))
    if Kp != K:
        x2d = jnp.pad(x2d, ((0, 0), (0, Kp - K)))  # tiny (<=127 lanes) pad

    # --- tile selection ------------------------------------------------------
    tm = _choose_tile(M, tm, 16)    # sublane axis of x/out; bf16 packs 16 rows
    tn = _choose_tile(N, tn, 128)   # lane axis of w/out (lane-dense)
    if Kp <= tk:
        tk = Kp
        k_steps = 1
    else:
        tk = _largest_aligned_divisor(Kp, tk, 128)  # divides Kp exactly
        k_steps = Kp // tk

    mg = _cdiv(M, tm)
    ng = _cdiv(N, tn)

    # v7x megacore: with a single M tile and a single N tile one TensorCore
    # would idle; split N so the "parallel" j axis has >= 2 tiles.
    if mg == 1 and ng == 1 and N >= 256:
        tn = _round_up(_cdiv(N, 2), 128)
        ng = _cdiv(N, tn)

    has_bias = bias is not None
    if has_bias:
        b2d = jnp.asarray(bias, jnp.float32).reshape(1, N)

    # 3-deep weight buffering whenever the kernel is weight-streaming bound
    # (small M) and there are enough weight blocks for it to matter.
    deep_wbuf = (M <= 256) and (ng * k_steps >= 3)
    w_bufs = 3 if deep_wbuf else 2

    # --- VMEM budget (raise scoped default, cap below physical) -------------
    vmem_needed = (
        2 * tm * tk * in_b            # double-buffered x tiles
        + w_bufs * tk * tn * w_b      # (double/triple)-buffered weight tiles
        + 2 * tm * tn * out_b         # double-buffered output tiles
        + (tm * tn * 4 if k_steps > 1 else 0)   # fp32 accumulator
        + (2 * tn * 4 if has_bias else 0)
    )
    vmem_limit = int(
        min(max(vmem_needed * 1.5 + (8 << 20), 32 << 20), vmem_cap * 3 // 4)
    )

    # Count re-streaming: x is read once per N tile, W once per M tile.
    cost = pl.CostEstimate(
        flops=2 * M * N * Kp,
        transcendentals=0,
        bytes_accessed=(M * Kp * in_b * ng + Kp * N * w_b * mg + M * N * out_b),
    )

    # --- specs / grid --------------------------------------------------------
    if k_steps > 1:
        grid = (mg, ng, k_steps)
        sem = ("parallel", "parallel", "arbitrary")
        x_spec = pl.BlockSpec((tm, tk), lambda i, j, k: (i, k))
        if deep_wbuf:
            w_spec = pl.BlockSpec(
                (tk, tn), lambda i, j, k: (k, j), pipeline_mode=pl.Buffered(3)
            )
        else:
            w_spec = pl.BlockSpec((tk, tn), lambda i, j, k: (k, j))
        in_specs = [x_spec, w_spec]
        operands = [x2d, weight_kn]
        if has_bias:
            in_specs.append(pl.BlockSpec((1, tn), lambda i, j, k: (0, j)))
            operands.append(b2d)
        out_specs = pl.BlockSpec((tm, tn), lambda i, j, k: (i, j))
        scratch = [pltpu.VMEM((tm, tn), jnp.float32)]
        kernel = _mm_acc_bias_kernel if has_bias else _mm_acc_kernel
    else:
        grid = (mg, ng)
        sem = ("parallel", "parallel")
        x_spec = pl.BlockSpec((tm, tk), lambda i, j: (i, 0))
        if deep_wbuf:
            w_spec = pl.BlockSpec(
                (tk, tn), lambda i, j: (0, j), pipeline_mode=pl.Buffered(3)
            )
        else:
            w_spec = pl.BlockSpec((tk, tn), lambda i, j: (0, j))
        in_specs = [x_spec, w_spec]
        operands = [x2d, weight_kn]
        if has_bias:
            in_specs.append(pl.BlockSpec((1, tn), lambda i, j: (0, j)))
            operands.append(b2d)
        out_specs = pl.BlockSpec((tm, tn), lambda i, j: (i, j))
        scratch = []
        kernel = _mm_single_bias_kernel if has_bias else _mm_single_kernel

    out = pl.pallas_call(
        kernel,
        out_shape=jax.ShapeDtypeStruct((M, N), x.dtype),
        grid_spec=pltpu.PrefetchScalarGridSpec(
            num_scalar_prefetch=0,
            grid=grid,
            in_specs=in_specs,
            out_specs=out_specs,
            scratch_shapes=scratch,
        ),
        compiler_params=pltpu.CompilerParams(
            dimension_semantics=sem,
            vmem_limit_bytes=vmem_limit,
        ),
        cost_estimate=cost,
    )(*operands)

    return out.reshape(*lead_shape, N)


# --------------------------------------------------------------------------
# Module wrapper (ColumnParallelLinear, bf16 path)
# --------------------------------------------------------------------------
class ColumnParallelLinearPallas:
    """JAX/Pallas counterpart of the PyTorch `ColumnParallelLinear` (bf16)."""

    def __init__(self, in_features, out_features, key, *, bias=False,
                 dtype=jnp.bfloat16, world_size=1):
        assert out_features % world_size == 0
        self.in_features = in_features
        self.out_features = out_features
        self.part_out_features = out_features // world_size

        kw, kb = jax.random.split(key)
        # Deterministic synthetic init (torch module uses torch.empty; we only
        # need deterministic, reasonable values).
        w = (
            jax.random.normal(
                kw, (self.part_out_features, in_features), jnp.float32
            )
            * (1.0 / math.sqrt(in_features))
        ).astype(dtype)
        self.weight = w                      # PyTorch (out, in) layout

        # Pre-transpose to (K, N) and pre-pad K to a 128-multiple ONCE here,
        # so the forward never copies the weight in HBM.
        kp = _round_up(in_features, 128)
        w_t = jnp.asarray(w.T)
        if kp != in_features:
            w_t = jnp.pad(w_t, ((0, kp - in_features), (0, 0)))
        self.weight_t = w_t                  # (Kp, N), zero rows in the pad

        if bias:
            self.bias = (
                jax.random.normal(kb, (self.part_out_features,), jnp.float32)
                * 0.02
            )
        else:
            self.bias = None                 # module default: bias=False

    def __call__(self, x):
        return pallas_linear(x, self.weight_t, self.bias)


# --------------------------------------------------------------------------
# Self-test
# --------------------------------------------------------------------------
if __name__ == "__main__":
    key = jax.random.PRNGKey(0)
    k_x1, k_w1, k_x2, k_w2, k_x3, k_w3, k_x4, k_w4 = jax.random.split(key, 8)

    def _ref(x, layer):
        y = jnp.dot(x.astype(jnp.float32), layer.weight.T.astype(jnp.float32))
        if layer.bias is not None:
            y = y + layer.bias.astype(jnp.float32)
        return y.astype(jnp.bfloat16)

    def _check(y, ref, shape, tag, tol=0.1):
        assert y.shape == shape, f"{tag}: shape {y.shape} != {shape}"
        assert y.dtype == jnp.bfloat16, f"{tag}: dtype {y.dtype}"
        err = jnp.max(jnp.abs(y.astype(jnp.float32) - ref.astype(jnp.float32)))
        assert float(err) < tol, f"{tag}: max abs error too large: {err}"

    # ---- Test 1: module defaults (no bias), aligned small shapes ----------
    batch, seq, in_f, out_f = 2, 8, 256, 256
    x1 = jax.random.normal(k_x1, (batch, seq, in_f), jnp.float32).astype(jnp.bfloat16)
    layer1 = ColumnParallelLinearPallas(in_f, out_f, k_w1)
    y1 = jax.block_until_ready(layer1(x1))
    _check(y1, _ref(x1, layer1), (batch, seq, out_f), "test1")

    # ---- Test 2: non-128-multiple out_features + fused bias + K-accum ------
    # tm=16 (full M), tn=128 (partial N tail), tk=128 (3 K steps, Buffered(3)).
    in_f2, out_f2 = 384, 320
    x2 = jax.random.normal(k_x2, (batch, seq, in_f2), jnp.float32).astype(jnp.bfloat16)
    layer2 = ColumnParallelLinearPallas(in_f2, out_f2, k_w2, bias=True)
    y2 = jax.block_until_ready(
        pallas_linear(x2, layer2.weight_t, layer2.bias, tm=16, tn=128, tk=128)
    )
    _check(y2, _ref(x2, layer2), (batch, seq, out_f2), "test2")

    # ---- Test 3: partial M tail (masked boundary block), single-K kernel ---
    in_f3, out_f3 = 256, 384
    x3 = jax.random.normal(k_x3, (2, 50, in_f3), jnp.float32).astype(jnp.bfloat16)
    layer3 = ColumnParallelLinearPallas(in_f3, out_f3, k_w3)
    y3 = jax.block_until_ready(
        pallas_linear(x3, layer3.weight_t, layer3.bias, tm=64, tn=128, tk=256)
    )
    _check(y3, _ref(x3, layer3), (2, 50, out_f3), "test3")

    # ---- Test 4: decode-like shape (tiny M) -> N split for megacore --------
    in_f4, out_f4 = 256, 512
    x4 = jax.random.normal(k_x4, (2, in_f4), jnp.float32).astype(jnp.bfloat16)
    layer4 = ColumnParallelLinearPallas(in_f4, out_f4, k_w4)
    y4 = jax.block_until_ready(layer4(x4))
    _check(y4, _ref(x4, layer4), (2, out_f4), "test4")

    print("KERNEL_OK")
</pallas_src>

<mosaic_0001>
module attributes {stable_mosaic.version = 11 : i64} {
  func.func @_mm_single_kernel(%arg0: i32, %arg1: i32, %arg2: memref<16x256xbf16, #tpu.memory_space<vmem>>, %arg3: memref<256x128xbf16, #tpu.memory_space<vmem>>, %arg4: memref<16x128xbf16, #tpu.memory_space<vmem>>) attributes {dimension_semantics = [#tpu.dimension_semantics<parallel>, #tpu.dimension_semantics<parallel>], iteration_bounds = array<i64: 1, 2>, scalar_prefetch = 0 : i64, scratch_operands = 0 : i64, tpu.core_type = #tpu.core_type<tc>, window_params = [{transform_indices = @transform_0, window_bounds = array<i64: 16, 256>}, {transform_indices = @transform_1, window_bounds = array<i64: 256, 128>}, {transform_indices = @transform_2, window_bounds = array<i64: 16, 128>}]} {
    %c0 = arith.constant 0 : index
    %c0_0 = arith.constant 0 : index
    %0 = vector.load %arg2[%c0, %c0_0] : memref<16x256xbf16, #tpu.memory_space<vmem>>, vector<16x256xbf16>
    %c0_1 = arith.constant 0 : index
    %c0_2 = arith.constant 0 : index
    %1 = vector.load %arg3[%c0_1, %c0_2] : memref<256x128xbf16, #tpu.memory_space<vmem>>, vector<256x128xbf16>
    %cst = arith.constant dense<0.000000e+00> : vector<16x128xf32>
    %2 = tpu.matmul %0, %1, %cst {dimension_numbers = #tpu.dot_dimension_numbers<[1], [0], [0], [1], [0, 0, 1, 1], [], []>} : vector<16x256xbf16>, vector<256x128xbf16>, vector<16x128xf32> -> vector<16x128xf32>
    %3 = arith.truncf %2 : vector<16x128xf32> to vector<16x128xbf16>
    %c0_3 = arith.constant 0 : index
    %c0_4 = arith.constant 0 : index
    %4 = vector.load %arg4[%c0_3, %c0_4] : memref<16x128xbf16, #tpu.memory_space<vmem>>, vector<16x128xbf16>
    tpu.vector_store %arg4[%c0_3, %c0_4], %3 {strides = array<i32>} : memref<16x128xbf16, #tpu.memory_space<vmem>>, vector<16x128xbf16>,
    return
  }
  func.func @transform_0(%arg0: i32, %arg1: i32) -> (i32, i32) {
    %c0_i32 = arith.constant 0 : i32
    %c0_i32_0 = arith.constant 0 : i32
    return %arg0, %c0_i32 : i32, i32
  }
  func.func @transform_1(%arg0: i32, %arg1: i32) -> (i32, i32) {
    %c0_i32 = arith.constant 0 : i32
    %c0_i32_0 = arith.constant 0 : i32
    return %c0_i32, %arg1 : i32, i32
  }
  func.func @transform_2(%arg0: i32, %arg1: i32) -> (i32, i32) {
    %c0_i32 = arith.constant 0 : i32
    return %arg0, %arg1 : i32, i32
  }
}

</mosaic_0001>

<llo_original>
// kernel: tpu_custom_call.1
$region0: #{tpu_custom_call.1}
  #allocation0 [shape = 'u32[]', space=smem, size = 0x4, offset = 0x4, fixed_abs, tag = 'smem constant byte address 0x4 - core index']
  #allocation1 [shape = 'u32[144,128]{1,0:T(1,128)}', space=vmem, size = 0x12000, scoped, tag = 'internal scratch']
  %s0 = inlined_call_operand.hbm [shape: bf16[16,256], index: 0, kind: input, shape index: {}]
  %s1 = inlined_call_operand.hbm [shape: bf16[256,256], index: 1, kind: input, shape index: {}]
  %s2 = inlined_call_operand.hbm [shape: bf16[16,256], index: 2, kind: output, shape index: {}]
  %s3 = sld [smem:[#allocation0]]
  $region49: #{tpu_custom_call.1} parent=0
    _
  %s5 = ssub.s32 1, %s3
  %s6 = scalar_select 0, %s5, %s3
  $region1: #{tpu_custom_call.1} parent=0
    #allocation2 [shape = 'u8[8192]{0}', space=vmem, size = 0x2000, scoped, tag = 'input window, operand 0, single buffered']
    #allocation3 [shape = 's32[2]{0}', space=sflag, size = 0x8, scoped, tag = 'scoped memory for tpu_custom_call.1']
    #allocation4 [shape = 's32[2]{0}', space=sflag, size = 0x8, scoped, tag = 'scoped memory for tpu_custom_call.1']
    #allocation5 [shape = 'u8[131072]{0}', space=vmem, size = 0x20000, scoped, tag = 'input window, operand 1']
    #allocation6 [shape = 's32[2]{0}', space=sflag, size = 0x8, scoped, tag = 'scoped memory for tpu_custom_call.1']
    #allocation7 [shape = 'u8[8192]{0}', space=vmem, size = 0x2000, scoped, tag = 'output window, operand 0']
    %7 = vsyncpa [#allocation3], 0
    %8 = vsyncpa [#allocation6], 0
    %s9 = scalar_lea.sflag [#allocation6], 1
    %10 = vsyncpa %s9, 0
    %11 = vsyncpa [#allocation4], 0
    %s12 = scalar_lea.sflag [#allocation4], 1
    %13 = vsyncpa %s12, 0
    loop: start=0, step=1, limit=4
    $region2: #{tpu_custom_call.1} parent=1 // loop_pre_header
      _
    $region3: #{tpu_custom_call.1} parent=1 // loop_header
      %s15 = sphi 0, %s19
      %p16 = scmp.ge.s32.totalorder %s15, 4
      %s22 = sphi 0, %s34
      %s23 = sphi 0, %s30
      %s24 = sphi 0, %s22
      %s25 = sphi 0, %s23
      %s26 = sphi 0, %s24
      %s27 = sphi 0, %s25
      %s37 = sphi 0, %s39
      %s40 = sphi 0, %s37
      %s41 = sphi 0, %s40
      %s57 = sphi 0, %s41
      %s63 = sphi 0, %s65
      %s66 = sphi 0, %s63
      %s67 = sphi 0, %s66
      %s83 = sphi 0, %s67
      %s91 = sphi 0, %s93
      %s94 = sphi 0, %s91
      %s95 = sphi 0, %s94
      %s111 = sphi 0, %s95
    $region4: #{tpu_custom_call.1} parent=1 // loop_header_branch
      %18 = sbr.rel (%p16) target = $region8
    $region5: #{tpu_custom_call.1} parent=1 // loop_body
      %s20 = ssub.s32 %s15, 1
      %s21 = ssub.s32 %s15, 2
      %s28 = sadd.s32 1, %s23
      %p29 = scmp.ge.s32.totalorder %s28, 2
      %s30 = scalar_select %p29, 0, %s28
      %s31 = sadd.s32 1, %s22
      %s32 = scalar_select %p29, %s31, %s22
      %p33 = scmp.ge.s32.totalorder %s32, 1
      %s34 = scalar_select %p33, 0, %s32
      %s35 = ssub.s32 %s22, %s34
      %p36 = scmp.eq.s32.totalorder %s35, 0
      %s38 = sadd.s32 %s37, 1
      %s39 = scalar_select %p36, %s37, %s38
      %p42 = pneg %p36
      %p43 = scmp.eq.s32.totalorder %s15, 1
      %p44 = por %p42, %p43
      %p45 = scmp.ne.s32.totalorder %s37, %s40
      %p46 = scmp.eq.s32.totalorder %s15, 0
      %p47 = por %p45, %p46
      %p48 = scmp.ne.s32.totalorder %s37, %s40
      %p49 = scmp.eq.s32.totalorder %s20, 1
      %p50 = por %p48, %p49
      %p51 = scmp.ne.s32.totalorder %s40, %s41
      %p52 = scmp.eq.s32.totalorder %s20, 0
      %p53 = por %p51, %p52
      %p54 = scmp.ne.s32.totalorder %s40, %s41
      %p55 = scmp.eq.s32.totalorder %s21, 1
      %p56 = por %p54, %p55
      %p58 = scmp.ne.s32.totalorder %s41, %s57
      %p59 = scmp.eq.s32.totalorder %s21, 0
      %p60 = por %p58, %p59
      %s61 = ssub.s32 %s23, %s30
      %p62 = scmp.eq.s32.totalorder %s61, 0
      %s64 = sadd.s32 %s63, 1
      %s65 = scalar_select %p62, %s63, %s64
      %p68 = pneg %p62
      %p69 = scmp.eq.s32.totalorder %s15, 1
      %p70 = por %p68, %p69
      %p71 = scmp.ne.s32.totalorder %s63, %s66
      %p72 = scmp.eq.s32.totalorder %s15, 0
      %p73 = por %p71, %p72
      %p74 = scmp.ne.s32.totalorder %s63, %s66
      %p75 = scmp.eq.s32.totalorder %s20, 1
      %p76 = por %p74, %p75
      %p77 = scmp.ne.s32.totalorder %s66, %s67
      %p78 = scmp.eq.s32.totalorder %s20, 0
      %p79 = por %p77, %p78
      %p80 = scmp.ne.s32.totalorder %s66, %s67
      %p81 = scmp.eq.s32.totalorder %s21, 1
      %p82 = por %p80, %p81
      %p84 = scmp.ne.s32.totalorder %s67, %s83
      %p85 = scmp.eq.s32.totalorder %s21, 0
      %p86 = por %p84, %p85
      %s87 = ssub.s32 %s22, %s34
      %s88 = ssub.s32 %s23, %s30
      %s89 = sor.u32 %s87, %s88
      %p90 = scmp.eq.s32.totalorder %s89, 0
      %s92 = sadd.s32 %s91, 1
      %s93 = scalar_select %p90, %s91, %s92
      %p96 = pneg %p90
      %p97 = scmp.eq.s32.totalorder %s15, 1
      %p98 = por %p96, %p97
      %p99 = scmp.ne.s32.totalorder %s91, %s94
      %p100 = scmp.eq.s32.totalorder %s15, 0
      %p101 = por %p99, %p100
      %p102 = scmp.ne.s32.totalorder %s91, %s94
      %p103 = scmp.eq.s32.totalorder %s20, 1
      %p104 = por %p102, %p103
      %p105 = scmp.ne.s32.totalorder %s94, %s95
      %p106 = scmp.eq.s32.totalorder %s20, 0
      %p107 = por %p105, %p106
      %p108 = scmp.ne.s32.totalorder %s94, %s95
      %p109 = scmp.eq.s32.totalorder %s21, 1
      %p110 = por %p108, %p109
      %p112 = scmp.ne.s32.totalorder %s95, %s111
      %p113 = scmp.eq.s32.totalorder %s21, 0
      %p114 = por %p112, %p113
      %p115 = scmp.le.s32.totalorder 1, %s15
      %p116 = scmp.lt.s32.totalorder %s15, 3
      %p117 = pnand %p115, %p116
      %p118 = pneg %p117
      // Predicated region
      $region9: #{tpu_custom_call.1} parent=5 // pred_check
        _
      $region10: #{tpu_custom_call.1} parent=5 // pred_check_branch
        %120 = sbr.rel (%p117) target = $region12
      $region11: #{tpu_custom_call.1} parent=5 // pred_region
        %s121 = ssub.s32 %s15, 1
        // Predicated region
        $region13: #{tpu_custom_call.1} parent=11 // pred_check
          %p122 = pneg %p53
        $region14: #{tpu_custom_call.1} parent=11 // pred_check_branch
          %124 = sbr.rel (%p122) target = $region16
        $region15: #{tpu_custom_call.1} parent=11 // pred_region
          %s125 = smul.u32 2, %s24
          %s127 = ssub.s32 256, 256
          %128 = vsyncadd [#allocation3], %s127
          %s129 = smul.addr %s125, 2
          %s130 = smul.addr %s129, 64
          %s131 = scalar_lea.hbm %s0, %s130
          %s132 = sshll.u32 [#allocation2], 4
          %s133 = int_to_ptr.vmem [resolvable:$true] %s132
          %138 = dma.hbm_to_vmem [thread:$0]  %s131, 256, %s133, [#allocation3], 128, 128, 8
        $region16: #{tpu_custom_call.1} parent=11 // pred_fallthru
          _
      $region12: #{tpu_custom_call.1} parent=5 // pred_fallthru
        _
      %p139 = scmp.lt.s32.totalorder %s15, 2
      // Predicated region
      $region17: #{tpu_custom_call.1} parent=5 // pred_check
        %p140 = pneg %p139
      $region18: #{tpu_custom_call.1} parent=5 // pred_check_branch
        %142 = sbr.rel (%p140) target = $region20
      $region19: #{tpu_custom_call.1} parent=5 // pred_region
        // Predicated region
        $region21: #{tpu_custom_call.1} parent=19 // pred_check
          %p143 = pneg %p73
        $region22: #{tpu_custom_call.1} parent=19 // pred_check_branch
          %145 = sbr.rel (%p143) target = $region24
        $region23: #{tpu_custom_call.1} parent=19 // pred_region
          %s146 = sand.u32 %s63, 1
          %s147 = scalar_lea.sflag [#allocation6], %s146
          %s148 = sand.u32 %s63, 1
          %s149 = smul.addr %s148, 128
          %s150 = scalar_lea.vmem [#allocation5], %s149
          %s152 = ssub.s32 2048, 2048
          %153 = vsyncadd %s147, %s152
          %s154 = smul.addr %s23, 64
          %s155 = scalar_lea.hbm %s1, %s154
          %s156 = sshll.u32 %s150, 4
          %s157 = int_to_ptr.vmem [resolvable:$true] %s156
          %162 = dma.hbm_to_vmem [thread:$0]  %s155, 2048, %s157, %s147, 128, 64, 4
        $region24: #{tpu_custom_call.1} parent=19 // pred_fallthru
          _
      $region20: #{tpu_custom_call.1} parent=5 // pred_fallthru
        _
      %p163 = scmp.le.s32.totalorder 1, %s15
      %p164 = scmp.lt.s32.totalorder %s15, 3
      %p165 = pnand %p163, %p164
      %p166 = pneg %p165
      // Predicated region
      $region25: #{tpu_custom_call.1} parent=5 // pred_check
        _
      $region26: #{tpu_custom_call.1} parent=5 // pred_check_branch
        %168 = sbr.rel (%p165) target = $region28
      $region27: #{tpu_custom_call.1} parent=5 // pred_region
        %s169 = ssub.s32 %s15, 1
        // Predicated region
        $region29: #{tpu_custom_call.1} parent=27 // pred_check
          %p170 = pneg %p53
        $region30: #{tpu_custom_call.1} parent=27 // pred_check_branch
          %172 = sbr.rel (%p170) target = $region32
        $region31: #{tpu_custom_call.1} parent=27 // pred_region
          %173 = dma.done [#allocation3], 256
        $region32: #{tpu_custom_call.1} parent=27 // pred_fallthru
          _
        %s174 = sand.u32 %s66, 1
        %s175 = scalar_lea.sflag [#allocation6], %s174
        %s176 = sand.u32 %s66, 1
        %s177 = smul.addr %s176, 128
        %s178 = scalar_lea.vmem [#allocation5], %s177
        // Predicated region
        $region33: #{tpu_custom_call.1} parent=27 // pred_check
          %p179 = pneg %p79
        $region34: #{tpu_custom_call.1} parent=27 // pred_check_branch
          %181 = sbr.rel (%p179) target = $region36
        $region35: #{tpu_custom_call.1} parent=27 // pred_region
          %182 = dma.done %s175, 2048
        $region36: #{tpu_custom_call.1} parent=27 // pred_fallthru
          _
        %p183 = pneg %p53
        %p184 = pneg %p50
        %s185 = sand.u32 %s66, 1
        %s186 = scalar_lea.sflag [#allocation6], %s185
        %s187 = sand.u32 %s66, 1
        %s188 = smul.addr %s187, 128
        %s189 = scalar_lea.vmem [#allocation5], %s188
        %p190 = pneg %p79
        %p191 = pneg %p76
        %p192 = pneg %p107
        %p193 = pneg %p104
        %s194 = sand.u32 %s94, 1
        %s195 = scalar_lea.sflag [#allocation4], %s194
        %s196 = sand.u32 %s94, 1
        %s197 = smul.addr %s196, 8
        %s198 = scalar_lea.vmem [#allocation7], %s197
        %s199 = smul.u32 2, %s24
        %s200 = smul.u32 2, %s24
        %v202 = vld [vmem:[#allocation2] sm:$0xff]
        %v203 = vld [vmem:[#allocation2 + $0x8] sm:$0xff]
        %v204 = vld [vmem:[%s178] sm:$0xf]
        %v205 = vld [vmem:[%s178 + $0x4] sm:$0xf]
        %v206 = vld [vmem:[%s178 + $0x8] sm:$0xf]
        %v207 = vld [vmem:[%s178 + $0xc] sm:$0xf]
        %v208 = vld [vmem:[%s178 + $0x10] sm:$0xf]
        %v209 = vld [vmem:[%s178 + $0x14] sm:$0xf]
        %v210 = vld [vmem:[%s178 + $0x18] sm:$0xf]
        %v211 = vld [vmem:[%s178 + $0x1c] sm:$0xf]
        %v212 = vld [vmem:[%s178 + $0x20] sm:$0xf]
        %v213 = vld [vmem:[%s178 + $0x24] sm:$0xf]
        %v214 = vld [vmem:[%s178 + $0x28] sm:$0xf]
        %v215 = vld [vmem:[%s178 + $0x2c] sm:$0xf]
        %v216 = vld [vmem:[%s178 + $0x30] sm:$0xf]
        %v217 = vld [vmem:[%s178 + $0x34] sm:$0xf]
        %v218 = vld [vmem:[%s178 + $0x38] sm:$0xf]
        %v219 = vld [vmem:[%s178 + $0x3c] sm:$0xf]
        %v220 = vld [vmem:[%s178 + $0x40] sm:$0xf]
        %v221 = vld [vmem:[%s178 + $0x44] sm:$0xf]
        %v222 = vld [vmem:[%s178 + $0x48] sm:$0xf]
        %v223 = vld [vmem:[%s178 + $0x4c] sm:$0xf]
        %v224 = vld [vmem:[%s178 + $0x50] sm:$0xf]
        %v225 = vld [vmem:[%s178 + $0x54] sm:$0xf]
        %v226 = vld [vmem:[%s178 + $0x58] sm:$0xf]
        %v227 = vld [vmem:[%s178 + $0x5c] sm:$0xf]
        %v228 = vld [vmem:[%s178 + $0x60] sm:$0xf]
        %v229 = vld [vmem:[%s178 + $0x64] sm:$0xf]
        %v230 = vld [vmem:[%s178 + $0x68] sm:$0xf]
        %v231 = vld [vmem:[%s178 + $0x6c] sm:$0xf]
        %v232 = vld [vmem:[%s178 + $0x70] sm:$0xf]
        %v233 = vld [vmem:[%s178 + $0x74] sm:$0xf]
        %v234 = vld [vmem:[%s178 + $0x78] sm:$0xf]
        %v235 = vld [vmem:[%s178 + $0x7c] sm:$0xf]
        %v238 = vunpack.c.l.b16 %v202
        %v239 = vunpack.c.h.b16 %v202
        %v240 = vunpack.c.l.b16 %v203
        %v241 = vunpack.c.h.b16 %v203
        %v242 = vpack.c.b16 %v240, %v238
        %v243 = vpack.c.b16 %v241, %v239
        %v278 = vunpack.c.l.b16 %v204
        %v279 = vunpack.c.l.b16 %v205
        %v280 = vunpack.c.l.b16 %v206
        %v281 = vunpack.c.l.b16 %v207
        %v282 = vunpack.c.l.b16 %v208
        %v283 = vunpack.c.l.b16 %v209
        %v284 = vunpack.c.l.b16 %v210
        %v285 = vunpack.c.l.b16 %v211
        %v286 = vunpack.c.l.b16 %v212
        %v287 = vunpack.c.l.b16 %v213
        %v288 = vunpack.c.l.b16 %v214
        %v289 = vunpack.c.l.b16 %v215
        %v290 = vunpack.c.l.b16 %v216
        %v291 = vunpack.c.l.b16 %v217
        %v292 = vunpack.c.l.b16 %v218
        %v293 = vunpack.c.l.b16 %v219
        %v294 = vunpack.c.l.b16 %v220
        %v295 = vunpack.c.l.b16 %v221
        %v296 = vunpack.c.l.b16 %v222
        %v297 = vunpack.c.l.b16 %v223
        %v298 = vunpack.c.l.b16 %v224
        %v299 = vunpack.c.l.b16 %v225
        %v300 = vunpack.c.l.b16 %v226
        %v301 = vunpack.c.l.b16 %v227
        %v302 = vunpack.c.l.b16 %v228
        %v303 = vunpack.c.l.b16 %v229
        %v304 = vunpack.c.l.b16 %v230
        %v305 = vunpack.c.l.b16 %v231
        %v306 = vunpack.c.l.b16 %v232
        %v307 = vunpack.c.l.b16 %v233
        %v308 = vunpack.c.l.b16 %v234
        %v309 = vunpack.c.l.b16 %v235
        %v310 = vpack.c.b16 %v279, %v278
        %v311 = vpack.c.b16 %v281, %v280
        %v312 = vpack.c.b16 %v283, %v282
        %v313 = vpack.c.b16 %v285, %v284
        %v314 = vpack.c.b16 %v287, %v286
        %v315 = vpack.c.b16 %v289, %v288
        %v316 = vpack.c.b16 %v291, %v290
        %v317 = vpack.c.b16 %v293, %v292
        %v318 = vpack.c.b16 %v295, %v294
        %v319 = vpack.c.b16 %v297, %v296
        %v320 = vpack.c.b16 %v299, %v298
        %v321 = vpack.c.b16 %v301, %v300
        %v322 = vpack.c.b16 %v303, %v302
        %v323 = vpack.c.b16 %v305, %v304
        %v324 = vpack.c.b16 %v307, %v306
        %v325 = vpack.c.b16 %v309, %v308
        %342 = vmatprep.subr.bf16.mxu0 0
        %343 = vmatpush1.bf16.msra.mxu0 %v310
        %344 = vmatprep.subr.bf16.mxu0 0
        %345 = vmatpush1.bf16.msra.mxu0 %v311
        %346 = vmatprep.subr.bf16.mxu0 0
        %347 = vmatpush1.bf16.msra.mxu0 %v312
        %348 = vmatprep.subr.bf16.mxu0 0
        %349 = vmatpush1.bf16.msra.mxu0 %v313
        %350 = vmatprep.subr.bf16.mxu0 0
        %351 = vmatpush1.bf16.msra.mxu0 %v314
        %352 = vmatprep.subr.bf16.mxu0 0
        %353 = vmatpush1.bf16.msra.mxu0 %v315
        %354 = vmatprep.subr.bf16.mxu0 0
        %355 = vmatpush1.bf16.msra.mxu0 %v316
        %356 = vmatprep.subr.bf16.mxu0 0
        %357 = vmatpush1.bf16.msra.mxu0 %v317
        %358 = vmatprep.subr.bf16.mxu0 0
        %359 = vmatpush1.bf16.msra.mxu0 %v318
        %360 = vmatprep.subr.bf16.mxu0 0
        %361 = vmatpush1.bf16.msra.mxu0 %v319
        %362 = vmatprep.subr.bf16.mxu0 0
        %363 = vmatpush1.bf16.msra.mxu0 %v320
        %364 = vmatprep.subr.bf16.mxu0 0
        %365 = vmatpush1.bf16.msra.mxu0 %v321
        %366 = vmatprep.subr.bf16.mxu0 0
        %367 = vmatpush1.bf16.msra.mxu0 %v322
        %368 = vmatprep.subr.bf16.mxu0 0
        %369 = vmatpush1.bf16.msra.mxu0 %v323
        %370 = vmatprep.subr.bf16.mxu0 0
        %371 = vmatpush1.bf16.msra.mxu0 %v324
        %372 = vmatprep.subr.bf16.mxu0 0
        %373 = vmatpush1.bf16.msra.mxu0 %v325
        %374 = vmatprep.mubr.bf16.mxu0 %v243
        %375 = vmatmul.mubr.bf16.gmra.mrb[0].mxu0 %v242
        %v376 = vpop.f32.mrb[0].mxu0
        %v377 = vadd.f32 0.0, %v376
        %v378 = vpop.f32.mrb[0].mxu0
        %v379 = vpop.f32.mrb[0].mxu0
        %v380 = vadd.f32 0.0, %v379
        %v381 = vpop.f32.mrb[0].mxu0
        %382 = vdwg.mxu0
        %v383 = vpack.c.bf16 %v380, %v377
        %v385 = vunpack.c.l.b16 %v383
        %v386 = vunpack.c.h.b16 %v383
        %v387 = vpack.c.b16 %v385, %v385
        %v388 = vpack.c.b16 %v386, %v386
        %391 = vst [vmem:[%s198] sm:$0xf] %v387
        %392 = vst [vmem:[%s198 + $0x4] sm:$0xf] %v388
        %s393 = sand.u32 %s94, 1
        %s394 = scalar_lea.sflag [#allocation4], %s393
        %s395 = sand.u32 %s94, 1
        %s396 = smul.addr %s395, 8
        %s397 = scalar_lea.vmem [#allocation7], %s396
        // Predicated region
        $region37: #{tpu_custom_call.1} parent=27 // pred_check
          %p398 = pneg %p104
        $region38: #{tpu_custom_call.1} parent=27 // pred_check_branch
          %400 = sbr.rel (%p398) target = $region40
        $region39: #{tpu_custom_call.1} parent=27 // pred_region
          %s401 = smul.u32 2, %s24
          %s403 = ssub.s32 128, 128
          %404 = vsyncadd %s394, %s403
          %s405 = smul.addr %s401, 2
          %s406 = sadd.s32 %s25, %s405
          %s407 = smul.addr %s406, 64
          %s408 = scalar_lea.hbm %s2, %s407
          %s409 = sshll.u32 %s397, 4
          %s410 = int_to_ptr.vmem [resolvable:$true] %s409
          %415 = dma.vmem_to_hbm [thread:$0]  %s410, 128, %s408, %s394, 64, 128, 4
        $region40: #{tpu_custom_call.1} parent=27 // pred_fallthru
          _
      $region28: #{tpu_custom_call.1} parent=5 // pred_fallthru
        _
      %p416 = scmp.le.s32.totalorder 2, %s15
      // Predicated region
      $region41: #{tpu_custom_call.1} parent=5 // pred_check
        %p417 = pneg %p416
      $region42: #{tpu_custom_call.1} parent=5 // pred_check_branch
        %419 = sbr.rel (%p417) target = $region44
      $region43: #{tpu_custom_call.1} parent=5 // pred_region
        %s420 = ssub.s32 %s15, 2
        // Predicated region
        $region45: #{tpu_custom_call.1} parent=43 // pred_check
          %p421 = pneg %p110
        $region46: #{tpu_custom_call.1} parent=43 // pred_check_branch
          %423 = sbr.rel (%p421) target = $region48
        $region47: #{tpu_custom_call.1} parent=43 // pred_region
          %s424 = sand.u32 %s95, 1
          %s425 = scalar_lea.sflag [#allocation4], %s424
          %s426 = sand.u32 %s95, 1
          %s427 = smul.addr %s426, 8
          %s428 = scalar_lea.vmem [#allocation7], %s427
          %429 = dma.done %s425, 128
        $region48: #{tpu_custom_call.1} parent=43 // pred_fallthru
          _
      $region44: #{tpu_custom_call.1} parent=5 // pred_fallthru
        _
    $region6: #{tpu_custom_call.1} parent=1 // loop_footer
      %s19 = sadd.s32 1, %s15
    $region7: #{tpu_custom_call.1} parent=1 // loop_footer_branch
      %14 = sbr.rel target = $region3
    $region8: #{tpu_custom_call.1} parent=1 // loop_exit
      _
    %430 = vsyncpa [#allocation3], 1
    %s431 = scalar_lea.sflag [#allocation3], 1
    %432 = vsyncpa %s431, 1
    %433 = vsyncpa [#allocation6], 1
    %s434 = scalar_lea.sflag [#allocation6], 1
    %435 = vsyncpa %s434, 1
    %436 = vsyncpa [#allocation4], 1
    %s437 = scalar_lea.sflag [#allocation4], 1
    %438 = vsyncpa %s437, 1

</llo_original>
